<compile_context>
chip_gen: v5e
topology: v5e:2x2
jax: 0.10.0
libtpu: 0.0.40
codegen_flags: <defaults>
</compile_context>

<pallas_src>
import functools

import jax
import jax.numpy as jnp
from jax.experimental import pallas as pl
from jax.experimental.pallas import tpu as pltpu

EPS = 1e-5  # torch.nn.LayerNorm default


def _vp_kernel(x_ref, w1_ref, b1_ref, g1_ref, be1_ref,
               w2_ref, b2_ref, wfused_ref, bfused_ref,
               mask_ref, out_ref, *, T, K, PAD):
    rows = x_ref.shape[0]                 # Bblk * T  (batch folded into the matmul M dim)
    nf = w1_ref.shape[2]                  # filter size F
    mm_dtype = w1_ref.dtype               # bf16 (perf) or f32 (tight-check) MXU operands
    inv_f = 1.0 / nf

    # ---- hoisted conv boundary masks (computed once per grid step, shared by both convs) ----
    # Row position inside its own sequence; sequences are stacked along the row dimension.
    t_in_seq = jax.lax.broadcasted_iota(jnp.int32, (rows, 1), 0) % T
    valid = {}
    for j in range(K):                    # static unrolled taps
        d = j - PAD
        if d != 0:
            valid[d] = jnp.logical_and(t_in_seq + d >= 0, t_in_seq + d <= T - 1)

    def conv3(inp_f32, w_ref_):
        # K accumulating (rows, C) @ (C, F) MXU dots.  No lane-concat im2col: with C < 128
        # the concat forces cross-lane relayouts that outweigh the extra MXU pushes.
        acc = None
        for j in range(K):
            d = j - PAD
            if d == 0:
                tap = inp_f32
            else:
                # jnp.roll with a static shift lowers to two sublane-contiguous slices +
                # concat (no gather).  TODO(synk): switch to pltpu.roll(axis=0) once the
                # sublane vrot lowering is verified on the target jaxlib.
                shifted = jnp.roll(inp_f32, shift=-d, axis=0)    # shifted[t] == inp[t + d]
                tap = jnp.where(valid[d], shifted, 0.0)          # zero padding at seq edges
            part = jnp.dot(tap.astype(mm_dtype), w_ref_[j],
                           preferred_element_type=jnp.float32)
            acc = part if acc is None else acc + part
        return acc

    def ln_stats(h):
        # One-pass LayerNorm statistics: var = E[x^2] - E[x]^2.
        s1 = jnp.sum(h, axis=-1, keepdims=True)
        s2 = jnp.sum(h * h, axis=-1, keepdims=True)
        mean = s1 * inv_f
        var = jnp.maximum(s2 * inv_f - mean * mean, 0.0)
        return mean, jax.lax.rsqrt(var + EPS)

    # Activations arrive as bf16 (halved HBM read); elementwise math runs in f32 (robust on
    # v5e which has no bf16 VPU path); MXU operands are cast back to mm_dtype per tap.
    x_f32 = x_ref[...].astype(jnp.float32)

    # conv1d_1 -> relu_1 -> layer_norm_1     (dropout_1 = identity in eval mode)
    h = jnp.maximum(conv3(x_f32, w1_ref) + b1_ref[...], 0.0)
    mean1, rstd1 = ln_stats(h)
    h1 = (h - mean1) * rstd1 * g1_ref[...] + be1_ref[...]

    # conv1d_2 -> relu_2 -> layer_norm_2     (dropout_2 = identity in eval mode)
    a = jnp.maximum(conv3(h1, w2_ref) + b2_ref[...], 0.0)
    mean2, rstd2 = ln_stats(a)
    norm2 = (a - mean2) * rstd2            # LN2 affine folded into the final linear

    # linear_layer fused with LN2 affine: (1, F) contracted with (rows, F) -> lane-dense
    # (1, rows) slab (wide unmasked store when rows % 128 == 0).
    wl = wfused_ref[...]
    val = jax.lax.dot_general(wl, norm2.astype(wl.dtype),
                              (((1,), (1,)), ((), ())),
                              preferred_element_type=jnp.float32)
    val = val + bfused_ref[...]                                   # (1, rows) + (1, 1)
    out_ref[...] = jnp.where(mask_ref[...].astype(jnp.int32) != 0, 0.0, val)


def variance_predictor(x, mask, params, *, use_bf16_matmul=True, batch_block=None,
                       target_rows=512):
    """x: (B, T, H) f32, mask: (B, T) bool (True = padded) -> (B, T) f32."""
    B, T, H = x.shape
    K, _, F_ = params["w1"].shape
    pad = (K - 1) // 2                     # == 1 for kernel_size 3 (conv2 uses padding=1 too)

    # --- grid / block selection ---------------------------------------------------------
    # ~target_rows rows per block (DMA/compute overlap, amortized per-step overhead),
    # G >= 2 when B > 1 (pipelining + v7x megacore), rows 8-divisible (BlockSpec tiling),
    # 128-divisible when possible (unmasked lane-dense store).  Blocks this size stay far
    # under v7x's 64 MiB VMEM.
    if batch_block is None:
        divisors = [d for d in range(1, B + 1) if B % d == 0]
        legal = [d for d in divisors if (d * T) % 8 == 0 or d == B]
        fit = [d for d in legal if d * T <= target_rows] or [min(legal)]
        pick = [d for d in fit if (d * T) % 128 == 0] or fit
        Bblk = max(pick)
        if B > 1 and Bblk == B:            # force >= 2 grid steps
            smaller = [d for d in pick if d < B] or [d for d in fit if d < B]
            if smaller:
                Bblk = max(smaller)
    else:
        Bblk = batch_block
        assert B % Bblk == 0, "batch_block must divide B"
    G = B // Bblk
    rows = Bblk * T

    mm_dtype = jnp.bfloat16 if use_bf16_matmul else jnp.float32

    # Activations: batch folded into rows, shipped at MXU-operand precision (bf16 halves the
    # dominant HBM read).  Mask ships as int8 (1 byte/elem).
    x2 = x.reshape(B * T, H).astype(mm_dtype)
    mask_i8 = mask.reshape(G, 1, rows).astype(jnp.int8)

    # Per-tap conv weights (tap j == torch weight[:, :, j].T), cast for the MXU.
    w1 = params["w1"].astype(mm_dtype)
    w2 = params["w2"].astype(mm_dtype)
    # LayerNorm2 affine folded into Linear(F, 1):
    #   out = sum_f norm_f * (g2*wlin)_f + (sum_f be2_f*wlin_f + blin)
    wfused = (params["g2"] * params["wlin"]).astype(mm_dtype)                 # (1, F)
    bfused = (jnp.sum(params["be2"] * params["wlin"])
              + params["blin"][0, 0]).reshape(1, 1).astype(jnp.float32)       # (1, 1)

    kernel = functools.partial(_vp_kernel, T=T, K=K, PAD=pad)

    def rep(a):                            # small resident operand (weights / biases)
        return pl.BlockSpec(a.shape, lambda i: (0,) * a.ndim)

    mm_bytes = 2 if use_bf16_matmul else 4
    cost = pl.CostEstimate(
        flops=int(2 * B * T * (K * H * F_ + K * F_ * F_ + F_) + 12 * B * T * F_),
        transcendentals=int(2 * B * T),
        bytes_accessed=int(B * T * H * mm_bytes + B * T + B * T * 4
                           + (K * H * F_ + K * F_ * F_ + F_) * mm_bytes + 6 * F_ * 4),
    )

    out = pl.pallas_call(
        kernel,
        out_shape=jax.ShapeDtypeStruct((G, 1, rows), jnp.float32),
        grid_spec=pltpu.PrefetchScalarGridSpec(
            num_scalar_prefetch=0,
            grid=(G,),
            in_specs=[
                pl.BlockSpec((rows, H), lambda i: (i, 0)),             # activations (bf16/f32)
                rep(w1), rep(params["b1"]), rep(params["g1"]), rep(params["be1"]),
                rep(w2), rep(params["b2"]),
                rep(wfused), rep(bfused),
                pl.BlockSpec((None, 1, rows), lambda i: (i, 0, 0)),    # mask (int8)
            ],
            out_specs=pl.BlockSpec((None, 1, rows), lambda i: (i, 0, 0)),  # lane-dense out
        ),
        compiler_params=pltpu.CompilerParams(
            dimension_semantics=("parallel",),        # independent batch tiles (v7x: 2 TCs)
            vmem_limit_bytes=32 * 1024 * 1024),
        cost_estimate=cost,
    )(x2, w1, params["b1"], params["g1"], params["be1"],
      w2, params["b2"], wfused, bfused, mask_i8)

    # TODO(synk): for very large rows-per-block, an inner row-tile loop (or pl.Buffered(3)
    # on the activation spec) would bound live intermediates further.
    return out.reshape(B, T)


def variance_predictor_reference(x, mask, params):
    """Pure-JAX reference for validation."""
    K = params["w1"].shape[0]
    pad = (K - 1) // 2
    B, T, H = x.shape

    def conv(inp, w, b):
        ipad = jnp.pad(inp, ((0, 0), (pad, pad), (0, 0)))
        out = sum(jnp.einsum("btc,cf->btf", ipad[:, j:j + T], w[j]) for j in range(K))
        return out + b[0]

    def ln(h, g, be):
        mean = jnp.mean(h, axis=-1, keepdims=True)
        var = jnp.mean((h - mean) ** 2, axis=-1, keepdims=True)
        return (h - mean) * jax.lax.rsqrt(var + EPS) * g + be

    h = jax.nn.relu(conv(x, params["w1"], params["b1"]))
    h = ln(h, params["g1"][0], params["be1"][0])
    h2 = jax.nn.relu(conv(h, params["w2"], params["b2"]))
    h2 = ln(h2, params["g2"][0], params["be2"][0])
    out = jnp.einsum("btf,f->bt", h2, params["wlin"][0]) + params["blin"][0, 0]
    return jnp.where(mask, 0.0, out)


def init_params(key, hidden, filt, k):
    ks = jax.random.split(key, 6)
    scale1 = 1.0 / jnp.sqrt(hidden * k)
    scale2 = 1.0 / jnp.sqrt(filt * k)
    return {
        # conv weights stored as (tap, in_ch, out_ch) == torch weight[:, :, j].T per tap
        "w1": jax.random.normal(ks[0], (k, hidden, filt), jnp.float32) * scale1,
        "b1": jax.random.normal(ks[1], (1, filt), jnp.float32) * 0.01,
        "g1": jnp.ones((1, filt), jnp.float32),
        "be1": jnp.zeros((1, filt), jnp.float32),
        "w2": jax.random.normal(ks[2], (k, filt, filt), jnp.float32) * scale2,
        "b2": jax.random.normal(ks[3], (1, filt), jnp.float32) * 0.01,
        "g2": jnp.ones((1, filt), jnp.float32),
        "be2": jnp.zeros((1, filt), jnp.float32),
        "wlin": jax.random.normal(ks[4], (1, filt), jnp.float32) * (1.0 / jnp.sqrt(filt)),
        "blin": jax.random.normal(ks[5], (1, 1), jnp.float32) * 0.01,
    }


if __name__ == "__main__":
    # model_config: encoder_hidden=32, filter_size=32, kernel_size=3, dropout (eval -> identity)
    B, T, H, F_, K = 2, 8, 32, 32, 3

    key = jax.random.PRNGKey(0)
    k_x, k_p = jax.random.split(key)
    x = jax.random.normal(k_x, (B, T, H), jnp.float32)
    lengths = jnp.array([[8], [6]], jnp.int32)               # pad-mask: True where padded
    mask = jnp.arange(T, dtype=jnp.int32)[None, :] >= lengths

    params = init_params(k_p, H, F_, K)
    ref = variance_predictor_reference(x, mask, params)

    # f32 MXU path: tight correctness check against the pure-JAX reference.
    out_f32 = jax.block_until_ready(
        variance_predictor(x, mask, params, use_bf16_matmul=False))
    assert out_f32.shape == (B, T)
    assert jnp.allclose(out_f32, ref, atol=3e-4, rtol=3e-4), (out_f32, ref)

    # bf16 MXU path (default perf variant): looser tolerance vs the f32 reference.
    out_bf16 = jax.block_until_ready(
        variance_predictor(x, mask, params, use_bf16_matmul=True))
    assert out_bf16.shape == (B, T)
    assert jnp.allclose(out_bf16, ref, atol=1e-1, rtol=1e-1), (out_bf16, ref)

    # TODO(synk): dropout layers are treated as identity (eval mode); training-mode dropout
    # would need pltpu.prng_* inside the kernel.
    print("KERNEL_OK")
</pallas_src>

<mosaic_0001>
module attributes {stable_mosaic.version = 11 : i64} {
  func.func @_vp_kernel(%arg0: i32, %arg1: memref<8x32xf32, #tpu.memory_space<vmem>>, %arg2: memref<3x32x32xf32, #tpu.memory_space<vmem>>, %arg3: memref<1x32xf32, #tpu.memory_space<vmem>>, %arg4: memref<1x32xf32, #tpu.memory_space<vmem>>, %arg5: memref<1x32xf32, #tpu.memory_space<vmem>>, %arg6: memref<3x32x32xf32, #tpu.memory_space<vmem>>, %arg7: memref<1x32xf32, #tpu.memory_space<vmem>>, %arg8: memref<1x32xf32, #tpu.memory_space<vmem>>, %arg9: memref<1x1xf32, #tpu.memory_space<vmem>>, %arg10: memref<1x1x8xi8, #tpu.memory_space<vmem>>, %arg11: memref<1x1x8xf32, #tpu.memory_space<vmem>>) attributes {dimension_semantics = [#tpu.dimension_semantics<parallel>], iteration_bounds = array<i64: 2>, scalar_prefetch = 0 : i64, scratch_operands = 0 : i64, tpu.core_type = #tpu.core_type<tc>, window_params = [{transform_indices = @transform_0, window_bounds = array<i64: 8, 32>}, {pipeline_mode = #tpu.pipeline_mode<synchronous>, transform_indices = @transform_1, window_bounds = array<i64: 3, 32, 32>}, {pipeline_mode = #tpu.pipeline_mode<synchronous>, transform_indices = @transform_2, window_bounds = array<i64: 1, 32>}, {pipeline_mode = #tpu.pipeline_mode<synchronous>, transform_indices = @transform_3, window_bounds = array<i64: 1, 32>}, {pipeline_mode = #tpu.pipeline_mode<synchronous>, transform_indices = @transform_4, window_bounds = array<i64: 1, 32>}, {pipeline_mode = #tpu.pipeline_mode<synchronous>, transform_indices = @transform_5, window_bounds = array<i64: 3, 32, 32>}, {pipeline_mode = #tpu.pipeline_mode<synchronous>, transform_indices = @transform_6, window_bounds = array<i64: 1, 32>}, {pipeline_mode = #tpu.pipeline_mode<synchronous>, transform_indices = @transform_7, window_bounds = array<i64: 1, 32>}, {pipeline_mode = #tpu.pipeline_mode<synchronous>, transform_indices = @transform_8, window_bounds = array<i64: 1, 1>}, {transform_indices = @transform_9, window_bounds = array<i64: 1, 1, 8>}, {transform_indices = @transform_10, window_bounds = array<i64: 1, 1, 8>}]} {
    %0 = tpu.iota {dimensions = array<i32: 0>} : vector<8x1xi32>
    %c8_i32 = arith.constant 8 : i32
    %c0_i32 = arith.constant 0 : i32
    %1 = arith.cmpi eq, %c8_i32, %c0_i32 : i32
    %c1_i32 = arith.constant 1 : i32
    %2 = arith.select %1, %c1_i32, %c8_i32 : i32
    %3 = vector.broadcast %2 : i32 to vector<8x1xi32>
    %4 = arith.remsi %0, %3 : vector<8x1xi32>
    %c0_i32_0 = arith.constant 0 : i32
    %5 = vector.broadcast %c0_i32_0 : i32 to vector<8x1xi32>
    %6 = arith.cmpi ne, %4, %5 : vector<8x1xi32>
    %c0_i32_1 = arith.constant 0 : i32
    %7 = vector.broadcast %c0_i32_1 : i32 to vector<8x1xi32>
    %8 = arith.cmpi slt, %4, %7 : vector<8x1xi32>
    %c0_i32_2 = arith.constant 0 : i32
    %9 = arith.cmpi slt, %2, %c0_i32_2 : i32
    %10 = vector.broadcast %9 : i1 to vector<8x1xi1>
    %11 = vector.broadcast %10 : vector<8x1xi1> to vector<8x1xi1>
    %12 = arith.xori %8, %11 : vector<8x1xi1>
    %13 = arith.andi %12, %6 : vector<8x1xi1>
    %14 = vector.broadcast %2 : i32 to vector<8x1xi32>
    %15 = arith.addi %4, %14 : vector<8x1xi32>
    %16 = arith.select %13, %15, %4 : vector<8x1xi1>, vector<8x1xi32>
    %c-1_i32 = arith.constant -1 : i32
    %17 = vector.broadcast %c-1_i32 : i32 to vector<8x1xi32>
    %18 = arith.addi %16, %17 : vector<8x1xi32>
    %c0_i32_3 = arith.constant 0 : i32
    %19 = vector.broadcast %c0_i32_3 : i32 to vector<8x1xi32>
    %20 = arith.cmpi sge, %18, %19 : vector<8x1xi32>
    %c-1_i32_4 = arith.constant -1 : i32
    %21 = vector.broadcast %c-1_i32_4 : i32 to vector<8x1xi32>
    %22 = arith.addi %16, %21 : vector<8x1xi32>
    %c7_i32 = arith.constant 7 : i32
    %23 = vector.broadcast %c7_i32 : i32 to vector<8x1xi32>
    %24 = arith.cmpi sle, %22, %23 : vector<8x1xi32>
    %25 = arith.andi %20, %24 : vector<8x1xi1>
    %c1_i32_5 = arith.constant 1 : i32
    %26 = vector.broadcast %c1_i32_5 : i32 to vector<8x1xi32>
    %27 = arith.addi %16, %26 : vector<8x1xi32>
    %c0_i32_6 = arith.constant 0 : i32
    %28 = vector.broadcast %c0_i32_6 : i32 to vector<8x1xi32>
    %29 = arith.cmpi sge, %27, %28 : vector<8x1xi32>
    %c1_i32_7 = arith.constant 1 : i32
    %30 = vector.broadcast %c1_i32_7 : i32 to vector<8x1xi32>
    %31 = arith.addi %16, %30 : vector<8x1xi32>
    %c7_i32_8 = arith.constant 7 : i32
    %32 = vector.broadcast %c7_i32_8 : i32 to vector<8x1xi32>
    %33 = arith.cmpi sle, %31, %32 : vector<8x1xi32>
    %34 = arith.andi %29, %33 : vector<8x1xi1>
    %c0 = arith.constant 0 : index
    %c0_9 = arith.constant 0 : index
    %35 = vector.load %arg1[%c0, %c0_9] : memref<8x32xf32, #tpu.memory_space<vmem>>, vector<8x32xf32>
    %36 = vector.extract_strided_slice %35 {offsets = [7, 0], sizes = [1, 32], strides = [1, 1]} : vector<8x32xf32> to vector<1x32xf32>
    %37 = vector.extract_strided_slice %35 {offsets = [0, 0], sizes = [7, 32], strides = [1, 1]} : vector<8x32xf32> to vector<7x32xf32>
    %38 = tpu.concatenate %36, %37 in 0 : vector<1x32xf32>, vector<7x32xf32> -> vector<8x32xf32>
    %cst = arith.constant 0.000000e+00 : f32
    %39 = vector.shape_cast %25 : vector<8x1xi1> to vector<8x1xi1>
    %40 = vector.broadcast %39 : vector<8x1xi1> to vector<8x32xi1>
    %41 = vector.broadcast %cst : f32 to vector<8x32xf32>
    %42 = arith.select %40, %38, %41 : vector<8x32xi1>, vector<8x32xf32>
    %c0_10 = arith.constant 0 : index
    %c0_11 = arith.constant 0 : index
    %c0_12 = arith.constant 0 : index
    %43 = vector.load %arg2[%c0_10, %c0_11, %c0_12] : memref<3x32x32xf32, #tpu.memory_space<vmem>>, vector<1x32x32xf32>
    %44 = vector.shape_cast %43 : vector<1x32x32xf32> to vector<32x32xf32>
    %cst_13 = arith.constant dense<0.000000e+00> : vector<8x32xf32>
    %45 = tpu.matmul %42, %44, %cst_13 {dimension_numbers = #tpu.dot_dimension_numbers<[1], [0], [0], [1], [0, 0, 1, 1], [], []>} : vector<8x32xf32>, vector<32x32xf32>, vector<8x32xf32> -> vector<8x32xf32>
    %c1 = arith.constant 1 : index
    %c0_14 = arith.constant 0 : index
    %c0_15 = arith.constant 0 : index
    %46 = vector.load %arg2[%c1, %c0_14, %c0_15] : memref<3x32x32xf32, #tpu.memory_space<vmem>>, vector<1x32x32xf32>
    %47 = vector.shape_cast %46 : vector<1x32x32xf32> to vector<32x32xf32>
    %cst_16 = arith.constant dense<0.000000e+00> : vector<8x32xf32>
    %48 = tpu.matmul %35, %47, %cst_16 {dimension_numbers = #tpu.dot_dimension_numbers<[1], [0], [0], [1], [0, 0, 1, 1], [], []>} : vector<8x32xf32>, vector<32x32xf32>, vector<8x32xf32> -> vector<8x32xf32>
    %49 = arith.addf %45, %48 : vector<8x32xf32>
    %50 = vector.extract_strided_slice %35 {offsets = [1, 0], sizes = [7, 32], strides = [1, 1]} : vector<8x32xf32> to vector<7x32xf32>
    %51 = vector.extract_strided_slice %35 {offsets = [0, 0], sizes = [1, 32], strides = [1, 1]} : vector<8x32xf32> to vector<1x32xf32>
    %52 = tpu.concatenate %50, %51 in 0 : vector<7x32xf32>, vector<1x32xf32> -> vector<8x32xf32>
    %cst_17 = arith.constant 0.000000e+00 : f32
    %53 = vector.shape_cast %34 : vector<8x1xi1> to vector<8x1xi1>
    %54 = vector.broadcast %53 : vector<8x1xi1> to vector<8x32xi1>
    %55 = vector.broadcast %cst_17 : f32 to vector<8x32xf32>
    %56 = arith.select %54, %52, %55 : vector<8x32xi1>, vector<8x32xf32>
    %c2 = arith.constant 2 : index
    %c0_18 = arith.constant 0 : index
    %c0_19 = arith.constant 0 : index
    %57 = vector.load %arg2[%c2, %c0_18, %c0_19] : memref<3x32x32xf32, #tpu.memory_space<vmem>>, vector<1x32x32xf32>
    %58 = vector.shape_cast %57 : vector<1x32x32xf32> to vector<32x32xf32>
    %cst_20 = arith.constant dense<0.000000e+00> : vector<8x32xf32>
    %59 = tpu.matmul %56, %58, %cst_20 {dimension_numbers = #tpu.dot_dimension_numbers<[1], [0], [0], [1], [0, 0, 1, 1], [], []>} : vector<8x32xf32>, vector<32x32xf32>, vector<8x32xf32> -> vector<8x32xf32>
    %60 = arith.addf %49, %59 : vector<8x32xf32>
    %c0_21 = arith.constant 0 : index
    %c0_22 = arith.constant 0 : index
    %61 = vector.load %arg3[%c0_21, %c0_22] : memref<1x32xf32, #tpu.memory_space<vmem>>, vector<1x32xf32>
    %62 = vector.broadcast %61 : vector<1x32xf32> to vector<8x32xf32>
    %63 = arith.addf %60, %62 : vector<8x32xf32>
    %cst_23 = arith.constant 0.000000e+00 : f32
    %64 = vector.broadcast %cst_23 : f32 to vector<8x32xf32>
    %65 = arith.maximumf %63, %64 : vector<8x32xf32>
    %cst_24 = arith.constant dense<0.000000e+00> : vector<8xf32>
    %66 = vector.multi_reduction <add>, %65, %cst_24 [1] : vector<8x32xf32> to vector<8xf32>
    %67 = vector.shape_cast %66 : vector<8xf32> to vector<8x1xf32>
    %68 = arith.mulf %65, %65 : vector<8x32xf32>
    %cst_25 = arith.constant dense<0.000000e+00> : vector<8xf32>
    %69 = vector.multi_reduction <add>, %68, %cst_25 [1] : vector<8x32xf32> to vector<8xf32>
    %70 = vector.shape_cast %69 : vector<8xf32> to vector<8x1xf32>
    %cst_26 = arith.constant 3.125000e-02 : f32
    %71 = vector.broadcast %cst_26 : f32 to vector<8x1xf32>
    %72 = arith.mulf %67, %71 : vector<8x1xf32>
    %cst_27 = arith.constant 3.125000e-02 : f32
    %73 = vector.broadcast %cst_27 : f32 to vector<8x1xf32>
    %74 = arith.mulf %70, %73 : vector<8x1xf32>
    %75 = arith.mulf %72, %72 : vector<8x1xf32>
    %76 = arith.subf %74, %75 : vector<8x1xf32>
    %cst_28 = arith.constant 0.000000e+00 : f32
    %77 = vector.broadcast %cst_28 : f32 to vector<8x1xf32>
    %78 = arith.maximumf %76, %77 : vector<8x1xf32>
    %cst_29 = arith.constant 9.99999974E-6 : f32
    %79 = vector.broadcast %cst_29 : f32 to vector<8x1xf32>
    %80 = arith.addf %78, %79 : vector<8x1xf32>
    %81 = math.rsqrt %80 : vector<8x1xf32>
    %82 = vector.broadcast %72 : vector<8x1xf32> to vector<8x32xf32>
    %83 = arith.subf %65, %82 : vector<8x32xf32>
    %84 = vector.broadcast %81 : vector<8x1xf32> to vector<8x32xf32>
    %85 = arith.mulf %83, %84 : vector<8x32xf32>
    %c0_30 = arith.constant 0 : index
    %c0_31 = arith.constant 0 : index
    %86 = vector.load %arg4[%c0_30, %c0_31] : memref<1x32xf32, #tpu.memory_space<vmem>>, vector<1x32xf32>
    %87 = vector.broadcast %86 : vector<1x32xf32> to vector<8x32xf32>
    %88 = arith.mulf %85, %87 : vector<8x32xf32>
    %c0_32 = arith.constant 0 : index
    %c0_33 = arith.constant 0 : index
    %89 = vector.load %arg5[%c0_32, %c0_33] : memref<1x32xf32, #tpu.memory_space<vmem>>, vector<1x32xf32>
    %90 = vector.broadcast %89 : vector<1x32xf32> to vector<8x32xf32>
    %91 = arith.addf %88, %90 : vector<8x32xf32>
    %92 = vector.extract_strided_slice %91 {offsets = [7, 0], sizes = [1, 32], strides = [1, 1]} : vector<8x32xf32> to vector<1x32xf32>
    %93 = vector.extract_strided_slice %91 {offsets = [0, 0], sizes = [7, 32], strides = [1, 1]} : vector<8x32xf32> to vector<7x32xf32>
    %94 = tpu.concatenate %92, %93 in 0 : vector<1x32xf32>, vector<7x32xf32> -> vector<8x32xf32>
    %cst_34 = arith.constant 0.000000e+00 : f32
    %95 = vector.shape_cast %25 : vector<8x1xi1> to vector<8x1xi1>
    %96 = vector.broadcast %95 : vector<8x1xi1> to vector<8x32xi1>
    %97 = vector.broadcast %cst_34 : f32 to vector<8x32xf32>
    %98 = arith.select %96, %94, %97 : vector<8x32xi1>, vector<8x32xf32>
    %c0_35 = arith.constant 0 : index
    %c0_36 = arith.constant 0 : index
    %c0_37 = arith.constant 0 : index
    %99 = vector.load %arg6[%c0_35, %c0_36, %c0_37] : memref<3x32x32xf32, #tpu.memory_space<vmem>>, vector<1x32x32xf32>
    %100 = vector.shape_cast %99 : vector<1x32x32xf32> to vector<32x32xf32>
    %cst_38 = arith.constant dense<0.000000e+00> : vector<8x32xf32>
    %101 = tpu.matmul %98, %100, %cst_38 {dimension_numbers = #tpu.dot_dimension_numbers<[1], [0], [0], [1], [0, 0, 1, 1], [], []>} : vector<8x32xf32>, vector<32x32xf32>, vector<8x32xf32> -> vector<8x32xf32>
    %c1_39 = arith.constant 1 : index
    %c0_40 = arith.constant 0 : index
    %c0_41 = arith.constant 0 : index
    %102 = vector.load %arg6[%c1_39, %c0_40, %c0_41] : memref<3x32x32xf32, #tpu.memory_space<vmem>>, vector<1x32x32xf32>
    %103 = vector.shape_cast %102 : vector<1x32x32xf32> to vector<32x32xf32>
    %cst_42 = arith.constant dense<0.000000e+00> : vector<8x32xf32>
    %104 = tpu.matmul %91, %103, %cst_42 {dimension_numbers = #tpu.dot_dimension_numbers<[1], [0], [0], [1], [0, 0, 1, 1], [], []>} : vector<8x32xf32>, vector<32x32xf32>, vector<8x32xf32> -> vector<8x32xf32>
    %105 = arith.addf %101, %104 : vector<8x32xf32>
    %106 = vector.extract_strided_slice %91 {offsets = [1, 0], sizes = [7, 32], strides = [1, 1]} : vector<8x32xf32> to vector<7x32xf32>
    %107 = vector.extract_strided_slice %91 {offsets = [0, 0], sizes = [1, 32], strides = [1, 1]} : vector<8x32xf32> to vector<1x32xf32>
    %108 = tpu.concatenate %106, %107 in 0 : vector<7x32xf32>, vector<1x32xf32> -> vector<8x32xf32>
    %cst_43 = arith.constant 0.000000e+00 : f32
    %109 = vector.shape_cast %34 : vector<8x1xi1> to vector<8x1xi1>
    %110 = vector.broadcast %109 : vector<8x1xi1> to vector<8x32xi1>
    %111 = vector.broadcast %cst_43 : f32 to vector<8x32xf32>
    %112 = arith.select %110, %108, %111 : vector<8x32xi1>, vector<8x32xf32>
    %c2_44 = arith.constant 2 : index
    %c0_45 = arith.constant 0 : index
    %c0_46 = arith.constant 0 : index
    %113 = vector.load %arg6[%c2_44, %c0_45, %c0_46] : memref<3x32x32xf32, #tpu.memory_space<vmem>>, vector<1x32x32xf32>
    %114 = vector.shape_cast %113 : vector<1x32x32xf32> to vector<32x32xf32>
    %cst_47 = arith.constant dense<0.000000e+00> : vector<8x32xf32>
    %115 = tpu.matmul %112, %114, %cst_47 {dimension_numbers = #tpu.dot_dimension_numbers<[1], [0], [0], [1], [0, 0, 1, 1], [], []>} : vector<8x32xf32>, vector<32x32xf32>, vector<8x32xf32> -> vector<8x32xf32>
    %116 = arith.addf %105, %115 : vector<8x32xf32>
    %c0_48 = arith.constant 0 : index
    %c0_49 = arith.constant 0 : index
    %117 = vector.load %arg7[%c0_48, %c0_49] : memref<1x32xf32, #tpu.memory_space<vmem>>, vector<1x32xf32>
    %118 = vector.broadcast %117 : vector<1x32xf32> to vector<8x32xf32>
    %119 = arith.addf %116, %118 : vector<8x32xf32>
    %cst_50 = arith.constant 0.000000e+00 : f32
    %120 = vector.broadcast %cst_50 : f32 to vector<8x32xf32>
    %121 = arith.maximumf %119, %120 : vector<8x32xf32>
    %cst_51 = arith.constant dense<0.000000e+00> : vector<8xf32>
    %122 = vector.multi_reduction <add>, %121, %cst_51 [1] : vector<8x32xf32> to vector<8xf32>
    %123 = vector.shape_cast %122 : vector<8xf32> to vector<8x1xf32>
    %124 = arith.mulf %121, %121 : vector<8x32xf32>
    %cst_52 = arith.constant dense<0.000000e+00> : vector<8xf32>
    %125 = vector.multi_reduction <add>, %124, %cst_52 [1] : vector<8x32xf32> to vector<8xf32>
    %126 = vector.shape_cast %125 : vector<8xf32> to vector<8x1xf32>
    %cst_53 = arith.constant 3.125000e-02 : f32
    %127 = vector.broadcast %cst_53 : f32 to vector<8x1xf32>
    %128 = arith.mulf %123, %127 : vector<8x1xf32>
    %cst_54 = arith.constant 3.125000e-02 : f32
    %129 = vector.broadcast %cst_54 : f32 to vector<8x1xf32>
    %130 = arith.mulf %126, %129 : vector<8x1xf32>
    %131 = arith.mulf %128, %128 : vector<8x1xf32>
    %132 = arith.subf %130, %131 : vector<8x1xf32>
    %cst_55 = arith.constant 0.000000e+00 : f32
    %133 = vector.broadcast %cst_55 : f32 to vector<8x1xf32>
    %134 = arith.maximumf %132, %133 : vector<8x1xf32>
    %cst_56 = arith.constant 9.99999974E-6 : f32
    %135 = vector.broadcast %cst_56 : f32 to vector<8x1xf32>
    %136 = arith.addf %134, %135 : vector<8x1xf32>
    %137 = math.rsqrt %136 : vector<8x1xf32>
    %138 = vector.broadcast %128 : vector<8x1xf32> to vector<8x32xf32>
    %139 = arith.subf %121, %138 : vector<8x32xf32>
    %140 = vector.broadcast %137 : vector<8x1xf32> to vector<8x32xf32>
    %141 = arith.mulf %139, %140 : vector<8x32xf32>
    %c0_57 = arith.constant 0 : index
    %c0_58 = arith.constant 0 : index
    %142 = vector.load %arg8[%c0_57, %c0_58] : memref<1x32xf32, #tpu.memory_space<vmem>>, vector<1x32xf32>
    %cst_59 = arith.constant dense<0.000000e+00> : vector<1x8xf32>
    %143 = tpu.matmul %142, %141, %cst_59 {dimension_numbers = #tpu.dot_dimension_numbers<[1], [1], [0], [0], [0, 0, 1, 0], [], []>} : vector<1x32xf32>, vector<8x32xf32>, vector<1x8xf32> -> vector<1x8xf32>
    %c0_60 = arith.constant 0 : index
    %c0_61 = arith.constant 0 : index
    %144 = vector.load %arg9[%c0_60, %c0_61] : memref<1x1xf32, #tpu.memory_space<vmem>>, vector<1x1xf32>
    %145 = vector.broadcast %144 : vector<1x1xf32> to vector<1x8xf32>
    %146 = arith.addf %143, %145 : vector<1x8xf32>
    %c0_62 = arith.constant 0 : index
    %c0_63 = arith.constant 0 : index
    %c0_64 = arith.constant 0 : index
    %147 = vector.load %arg10[%c0_62, %c0_63, %c0_64] : memref<1x1x8xi8, #tpu.memory_space<vmem>>, vector<1x1x8xi8>
    %148 = vector.shape_cast %147 : vector<1x1x8xi8> to vector<1x8xi8>
    %149 = arith.extsi %148 : vector<1x8xi8> to vector<1x8xi32>
    %c0_i32_65 = arith.constant 0 : i32
    %150 = vector.broadcast %c0_i32_65 : i32 to vector<1x8xi32>
    %151 = arith.cmpi ne, %149, %150 : vector<1x8xi32>
    %cst_66 = arith.constant 0.000000e+00 : f32
    %152 = vector.broadcast %cst_66 : f32 to vector<1x8xf32>
    %153 = arith.select %151, %152, %146 : vector<1x8xi1>, vector<1x8xf32>
    %c0_67 = arith.constant 0 : index
    %c0_68 = arith.constant 0 : index
    %c0_69 = arith.constant 0 : index
    %154 = vector.load %arg11[%c0_67, %c0_68, %c0_69] : memref<1x1x8xf32, #tpu.memory_space<vmem>>, vector<1x1x8xf32>
    %155 = vector.shape_cast %154 : vector<1x1x8xf32> to vector<1x8xf32>
    %156 = vector.shape_cast %153 : vector<1x8xf32> to vector<1x1x8xf32>
    tpu.vector_store %arg11[%c0_67, %c0_68, %c0_69], %156 {strides = array<i32>} : memref<1x1x8xf32, #tpu.memory_space<vmem>>, vector<1x1x8xf32>,
    return
  }
  func.func @transform_0(%arg0: i32) -> (i32, i32) {
    %c0_i32 = arith.constant 0 : i32
    %c0_i32_0 = arith.constant 0 : i32
    return %arg0, %c0_i32 : i32, i32
  }
  func.func @transform_1(%arg0: i32) -> (i32, i32, i32) {
    %c0_i32 = arith.constant 0 : i32
    %c0_i32_0 = arith.constant 0 : i32
    %c0_i32_1 = arith.constant 0 : i32
    %c0_i32_2 = arith.constant 0 : i32
    return %c0_i32, %c0_i32_0, %c0_i32_1 : i32, i32, i32
  }
  func.func @transform_2(%arg0: i32) -> (i32, i32) {
    %c0_i32 = arith.constant 0 : i32
    %c0_i32_0 = arith.constant 0 : i32
    %c0_i32_1 = arith.constant 0 : i32
    return %c0_i32, %c0_i32_0 : i32, i32
  }
  func.func @transform_3(%arg0: i32) -> (i32, i32) {
    %c0_i32 = arith.constant 0 : i32
    %c0_i32_0 = arith.constant 0 : i32
    %c0_i32_1 = arith.constant 0 : i32
    return %c0_i32, %c0_i32_0 : i32, i32
  }
  func.func @transform_4(%arg0: i32) -> (i32, i32) {
    %c0_i32 = arith.constant 0 : i32
    %c0_i32_0 = arith.constant 0 : i32
    %c0_i32_1 = arith.constant 0 : i32
    return %c0_i32, %c0_i32_0 : i32, i32
  }
  func.func @transform_5(%arg0: i32) -> (i32, i32, i32) {
    %c0_i32 = arith.constant 0 : i32
    %c0_i32_0 = arith.constant 0 : i32
    %c0_i32_1 = arith.constant 0 : i32
    %c0_i32_2 = arith.constant 0 : i32
    return %c0_i32, %c0_i32_0, %c0_i32_1 : i32, i32, i32
  }
  func.func @transform_6(%arg0: i32) -> (i32, i32) {
    %c0_i32 = arith.constant 0 : i32
    %c0_i32_0 = arith.constant 0 : i32
    %c0_i32_1 = arith.constant 0 : i32
    return %c0_i32, %c0_i32_0 : i32, i32
  }
  func.func @transform_7(%arg0: i32) -> (i32, i32) {
    %c0_i32 = arith.constant 0 : i32
    %c0_i32_0 = arith.constant 0 : i32
    %c0_i32_1 = arith.constant 0 : i32
    return %c0_i32, %c0_i32_0 : i32, i32
  }
  func.func @transform_8(%arg0: i32) -> (i32, i32) {
    %c0_i32 = arith.constant 0 : i32
    %c0_i32_0 = arith.constant 0 : i32
    %c0_i32_1 = arith.constant 0 : i32
    return %c0_i32, %c0_i32_0 : i32, i32
  }
  func.func @transform_9(%arg0: i32) -> (i32, i32, i32) {
    %c0_i32 = arith.constant 0 : i32
    %c0_i32_0 = arith.constant 0 : i32
    %c0_i32_1 = arith.constant 0 : i32
    return %arg0, %c0_i32, %c0_i32_0 : i32, i32, i32
  }
  func.func @transform_10(%arg0: i32) -> (i32, i32, i32) {
    %c0_i32 = arith.constant 0 : i32
    %c0_i32_0 = arith.constant 0 : i32
    %c0_i32_1 = arith.constant 0 : i32
    return %arg0, %c0_i32, %c0_i32_0 : i32, i32, i32
  }
}

</mosaic_0001>

<llo_original>
// kernel: tpu_custom_call.1
$region0: #{tpu_custom_call.1}
  #allocation0 [shape = 'u32[]', space=smem, size = 0x4, offset = 0x4, fixed_abs, tag = 'smem constant byte address 0x4 - core index']
  #allocation1 [shape = 'u32[72,128]{1,0:T(1,128)}', space=vmem, size = 0x9000, scoped, tag = 'internal scratch']
  #allocation2 [shape = 'f32[1,1]{1,0:T(1,128)S(1)}', space=vmem, size = 0x200, scoped, tag = 'scoped memory for tpu_custom_call.1']
  %s0 = inlined_call_operand.hbm [shape: f32[16,32], index: 0, kind: input, shape index: {}]
  %s1 = inlined_call_operand.hbm [shape: f32[3,32,32], index: 1, kind: input, shape index: {}]
  %s2 = inlined_call_operand.vmem [shape: f32[1,32], index: 2, kind: input, shape index: {}]
  %s3 = inlined_call_operand.vmem [shape: f32[1,32], index: 3, kind: input, shape index: {}]
  %s4 = inlined_call_operand.vmem [shape: f32[1,32], index: 4, kind: input, shape index: {}]
  %s5 = inlined_call_operand.hbm [shape: f32[3,32,32], index: 5, kind: input, shape index: {}]
  %s6 = inlined_call_operand.vmem [shape: f32[1,32], index: 6, kind: input, shape index: {}]
  %s7 = inlined_call_operand.vmem [shape: f32[1,32], index: 7, kind: input, shape index: {}]
  %s8 = inlined_call_operand.<no memory space> [shape: f32[1,1], index: 8, kind: input, shape index: {}]
  %s9 = inlined_call_operand.vmem [shape: s8[2,1,8], index: 9, kind: input, shape index: {}]
  %s10 = inlined_call_operand.hbm [shape: f32[2,1,8], index: 10, kind: output, shape index: {}]
  %s11 = sld [smem:[#allocation0]]
  $region85: #{tpu_custom_call.1} parent=0
    _
  %s13 = ssub.s32 1, %s11
  %s14 = scalar_select 0, %s13, %s11
  %v15 = vstv %s8
  %16 = vst [vmem:[#allocation2] sm:$0x1] %v15
  $region1: #{tpu_custom_call.1} parent=0
    #allocation3 [shape = 'u8[8192]{0}', space=vmem, size = 0x2000, scoped, tag = 'input window, operand 0']
    #allocation4 [shape = 's32[2]{0}', space=sflag, size = 0x8, scoped, tag = 'scoped memory for tpu_custom_call.1']
    #allocation5 [shape = 's32[2]{0}', space=sflag, size = 0x8, scoped, tag = 'scoped memory for tpu_custom_call.1']
    #allocation6 [shape = 'u8[49152]{0}', space=vmem, size = 0xc000, scoped, tag = 'input window, operand 1, single buffered']
    #allocation7 [shape = 's32[1]{0}', space=sflag, size = 0x4, scoped, tag = 'scoped memory for tpu_custom_call.1']
    #allocation8 [shape = 'u8[49152]{0}', space=vmem, size = 0xc000, scoped, tag = 'input window, operand 5, single buffered']
    #allocation9 [shape = 'u8[1024]{0}', space=vmem, size = 0x400, scoped, tag = 'output window, operand 0']
    %17 = vsyncpa [#allocation4], 0
    %s18 = scalar_lea.sflag [#allocation4], 1
    %19 = vsyncpa %s18, 0
    %20 = vsyncpa [#allocation7], 0
    %21 = vsyncpa [#allocation5], 0
    %s22 = scalar_lea.sflag [#allocation5], 1
    %23 = vsyncpa %s22, 0
    loop: start=0, step=1, limit=4
    $region2: #{tpu_custom_call.1} parent=1 // loop_pre_header
      _
    $region3: #{tpu_custom_call.1} parent=1 // loop_header
      %s25 = sphi 0, %s29
      %p26 = scmp.ge.s32.totalorder %s25, 4
      %s35 = sphi 0, %s37
      %s38 = sphi 0, %s35
      %s39 = sphi 0, %s38
      %s55 = sphi 0, %s39
      %s59 = sphi 0, %s59
      %s61 = sphi 0, %s59
      %s62 = sphi 0, %s61
      %s76 = sphi 0, %s62
      %s80 = sphi 0, %s80
      %s82 = sphi 0, %s80
      %s83 = sphi 0, %s82
      %s97 = sphi 0, %s83
      %s101 = sphi 0, %s101
      %s103 = sphi 0, %s101
      %s104 = sphi 0, %s103
      %s118 = sphi 0, %s104
      %s122 = sphi 0, %s122
      %s124 = sphi 0, %s122
      %s125 = sphi 0, %s124
      %s139 = sphi 0, %s125
      %s143 = sphi 0, %s143
      %s145 = sphi 0, %s143
      %s146 = sphi 0, %s145
      %s160 = sphi 0, %s146
      %s164 = sphi 0, %s164
      %s166 = sphi 0, %s164
      %s167 = sphi 0, %s166
      %s181 = sphi 0, %s167
      %s185 = sphi 0, %s185
      %s187 = sphi 0, %s185
      %s188 = sphi 0, %s187
      %s202 = sphi 0, %s188
      %s206 = sphi 0, %s206
      %s208 = sphi 0, %s206
      %s209 = sphi 0, %s208
      %s223 = sphi 0, %s209
      %s229 = sphi 0, %s231
      %s232 = sphi 0, %s229
      %s233 = sphi 0, %s232
      %s249 = sphi 0, %s233
      %s255 = sphi 0, %s257
      %s258 = sphi 0, %s255
      %s259 = sphi 0, %s258
      %s275 = sphi 0, %s259
    $region4: #{tpu_custom_call.1} parent=1 // loop_header_branch
      %28 = sbr.rel (%p26) target = $region8
    $region5: #{tpu_custom_call.1} parent=1 // loop_body
      %s30 = ssub.s32 %s25, 1
      %s31 = ssub.s32 %s25, 2
      %s32 = sadd.s32 %s25, 1
      %s33 = ssub.s32 %s25, %s32
      %p34 = scmp.eq.s32.totalorder %s33, 0
      %s36 = sadd.s32 %s35, 1
      %s37 = scalar_select %p34, %s35, %s36
      %p40 = pneg %p34
      %p41 = scmp.eq.s32.totalorder %s25, 1
      %p42 = por %p40, %p41
      %p43 = scmp.ne.s32.totalorder %s35, %s38
      %p44 = scmp.eq.s32.totalorder %s25, 0
      %p45 = por %p43, %p44
      %p46 = scmp.ne.s32.totalorder %s35, %s38
      %p47 = scmp.eq.s32.totalorder %s30, 1
      %p48 = por %p46, %p47
      %p49 = scmp.ne.s32.totalorder %s38, %s39
      %p50 = scmp.eq.s32.totalorder %s30, 0
      %p51 = por %p49, %p50
      %p52 = scmp.ne.s32.totalorder %s38, %s39
      %p53 = scmp.eq.s32.totalorder %s31, 1
      %p54 = por %p52, %p53
      %p56 = scmp.ne.s32.totalorder %s39, %s55
      %p57 = scmp.eq.s32.totalorder %s31, 0
      %p58 = por %p56, %p57
      %s60 = sadd.s32 %s59, 1
      %p63 = scmp.eq.s32.totalorder %s25, 1
      %p64 = scmp.ne.s32.totalorder %s59, %s61
      %p65 = scmp.eq.s32.totalorder %s25, 0
      %p66 = por %p64, %p65
      %p67 = scmp.ne.s32.totalorder %s59, %s61
      %p68 = scmp.eq.s32.totalorder %s30, 1
      %p69 = por %p67, %p68
      %p70 = scmp.ne.s32.totalorder %s61, %s62
      %p71 = scmp.eq.s32.totalorder %s30, 0
      %p72 = por %p70, %p71
      %p73 = scmp.ne.s32.totalorder %s61, %s62
      %p74 = scmp.eq.s32.totalorder %s31, 1
      %p75 = por %p73, %p74
      %p77 = scmp.ne.s32.totalorder %s62, %s76
      %p78 = scmp.eq.s32.totalorder %s31, 0
      %p79 = por %p77, %p78
      %s81 = sadd.s32 %s80, 1
      %p84 = scmp.eq.s32.totalorder %s25, 1
      %p85 = scmp.ne.s32.totalorder %s80, %s82
      %p86 = scmp.eq.s32.totalorder %s25, 0
      %p87 = por %p85, %p86
      %p88 = scmp.ne.s32.totalorder %s80, %s82
      %p89 = scmp.eq.s32.totalorder %s30, 1
      %p90 = por %p88, %p89
      %p91 = scmp.ne.s32.totalorder %s82, %s83
      %p92 = scmp.eq.s32.totalorder %s30, 0
      %p93 = por %p91, %p92
      %p94 = scmp.ne.s32.totalorder %s82, %s83
      %p95 = scmp.eq.s32.totalorder %s31, 1
      %p96 = por %p94, %p95
      %p98 = scmp.ne.s32.totalorder %s83, %s97
      %p99 = scmp.eq.s32.totalorder %s31, 0
      %p100 = por %p98, %p99
      %s102 = sadd.s32 %s101, 1
      %p105 = scmp.eq.s32.totalorder %s25, 1
      %p106 = scmp.ne.s32.totalorder %s101, %s103
      %p107 = scmp.eq.s32.totalorder %s25, 0
      %p108 = por %p106, %p107
      %p109 = scmp.ne.s32.totalorder %s101, %s103
      %p110 = scmp.eq.s32.totalorder %s30, 1
      %p111 = por %p109, %p110
      %p112 = scmp.ne.s32.totalorder %s103, %s104
      %p113 = scmp.eq.s32.totalorder %s30, 0
      %p114 = por %p112, %p113
      %p115 = scmp.ne.s32.totalorder %s103, %s104
      %p116 = scmp.eq.s32.totalorder %s31, 1
      %p117 = por %p115, %p116
      %p119 = scmp.ne.s32.totalorder %s104, %s118
      %p120 = scmp.eq.s32.totalorder %s31, 0
      %p121 = por %p119, %p120
      %s123 = sadd.s32 %s122, 1
      %p126 = scmp.eq.s32.totalorder %s25, 1
      %p127 = scmp.ne.s32.totalorder %s122, %s124
      %p128 = scmp.eq.s32.totalorder %s25, 0
      %p129 = por %p127, %p128
      %p130 = scmp.ne.s32.totalorder %s122, %s124
      %p131 = scmp.eq.s32.totalorder %s30, 1
      %p132 = por %p130, %p131
      %p133 = scmp.ne.s32.totalorder %s124, %s125
      %p134 = scmp.eq.s32.totalorder %s30, 0
      %p135 = por %p133, %p134
      %p136 = scmp.ne.s32.totalorder %s124, %s125
      %p137 = scmp.eq.s32.totalorder %s31, 1
      %p138 = por %p136, %p137
      %p140 = scmp.ne.s32.totalorder %s125, %s139
      %p141 = scmp.eq.s32.totalorder %s31, 0
      %p142 = por %p140, %p141
      %s144 = sadd.s32 %s143, 1
      %p147 = scmp.eq.s32.totalorder %s25, 1
      %p148 = scmp.ne.s32.totalorder %s143, %s145
      %p149 = scmp.eq.s32.totalorder %s25, 0
      %p150 = por %p148, %p149
      %p151 = scmp.ne.s32.totalorder %s143, %s145
      %p152 = scmp.eq.s32.totalorder %s30, 1
      %p153 = por %p151, %p152
      %p154 = scmp.ne.s32.totalorder %s145, %s146
      %p155 = scmp.eq.s32.totalorder %s30, 0
      %p156 = por %p154, %p155
      %p157 = scmp.ne.s32.totalorder %s145, %s146
      %p158 = scmp.eq.s32.totalorder %s31, 1
      %p159 = por %p157, %p158
      %p161 = scmp.ne.s32.totalorder %s146, %s160
      %p162 = scmp.eq.s32.totalorder %s31, 0
      %p163 = por %p161, %p162
      %s165 = sadd.s32 %s164, 1
      %p168 = scmp.eq.s32.totalorder %s25, 1
      %p169 = scmp.ne.s32.totalorder %s164, %s166
      %p170 = scmp.eq.s32.totalorder %s25, 0
      %p171 = por %p169, %p170
      %p172 = scmp.ne.s32.totalorder %s164, %s166
      %p173 = scmp.eq.s32.totalorder %s30, 1
      %p174 = por %p172, %p173
      %p175 = scmp.ne.s32.totalorder %s166, %s167
      %p176 = scmp.eq.s32.totalorder %s30, 0
      %p177 = por %p175, %p176
      %p178 = scmp.ne.s32.totalorder %s166, %s167
      %p179 = scmp.eq.s32.totalorder %s31, 1
      %p180 = por %p178, %p179
      %p182 = scmp.ne.s32.totalorder %s167, %s181
      %p183 = scmp.eq.s32.totalorder %s31, 0
      %p184 = por %p182, %p183
      %s186 = sadd.s32 %s185, 1
      %p189 = scmp.eq.s32.totalorder %s25, 1
      %p190 = scmp.ne.s32.totalorder %s185, %s187
      %p191 = scmp.eq.s32.totalorder %s25, 0
      %p192 = por %p190, %p191
      %p193 = scmp.ne.s32.totalorder %s185, %s187
      %p194 = scmp.eq.s32.totalorder %s30, 1
      %p195 = por %p193, %p194
      %p196 = scmp.ne.s32.totalorder %s187, %s188
      %p197 = scmp.eq.s32.totalorder %s30, 0
      %p198 = por %p196, %p197
      %p199 = scmp.ne.s32.totalorder %s187, %s188
      %p200 = scmp.eq.s32.totalorder %s31, 1
      %p201 = por %p199, %p200
      %p203 = scmp.ne.s32.totalorder %s188, %s202
      %p204 = scmp.eq.s32.totalorder %s31, 0
      %p205 = por %p203, %p204
      %s207 = sadd.s32 %s206, 1
      %p210 = scmp.eq.s32.totalorder %s25, 1
      %p211 = scmp.ne.s32.totalorder %s206, %s208
      %p212 = scmp.eq.s32.totalorder %s25, 0
      %p213 = por %p211, %p212
      %p214 = scmp.ne.s32.totalorder %s206, %s208
      %p215 = scmp.eq.s32.totalorder %s30, 1
      %p216 = por %p214, %p215
      %p217 = scmp.ne.s32.totalorder %s208, %s209
      %p218 = scmp.eq.s32.totalorder %s30, 0
      %p219 = por %p217, %p218
      %p220 = scmp.ne.s32.totalorder %s208, %s209
      %p221 = scmp.eq.s32.totalorder %s31, 1
      %p222 = por %p220, %p221
      %p224 = scmp.ne.s32.totalorder %s209, %s223
      %p225 = scmp.eq.s32.totalorder %s31, 0
      %p226 = por %p224, %p225
      %s227 = ssub.s32 %s25, %s32
      %p228 = scmp.eq.s32.totalorder %s227, 0
      %s230 = sadd.s32 %s229, 1
      %s231 = scalar_select %p228, %s229, %s230
      %p234 = pneg %p228
      %p235 = scmp.eq.s32.totalorder %s25, 1
      %p236 = por %p234, %p235
      %p237 = scmp.ne.s32.totalorder %s229, %s232
      %p238 = scmp.eq.s32.totalorder %s25, 0
      %p239 = por %p237, %p238
      %p240 = scmp.ne.s32.totalorder %s229, %s232
      %p241 = scmp.eq.s32.totalorder %s30, 1
      %p242 = por %p240, %p241
      %p243 = scmp.ne.s32.totalorder %s232, %s233
      %p244 = scmp.eq.s32.totalorder %s30, 0
      %p245 = por %p243, %p244
      %p246 = scmp.ne.s32.totalorder %s232, %s233
      %p247 = scmp.eq.s32.totalorder %s31, 1
      %p248 = por %p246, %p247
      %p250 = scmp.ne.s32.totalorder %s233, %s249
      %p251 = scmp.eq.s32.totalorder %s31, 0
      %p252 = por %p250, %p251
      %s253 = ssub.s32 %s25, %s32
      %p254 = scmp.eq.s32.totalorder %s253, 0
      %s256 = sadd.s32 %s255, 1
      %s257 = scalar_select %p254, %s255, %s256
      %p260 = pneg %p254
      %p261 = scmp.eq.s32.totalorder %s25, 1
      %p262 = por %p260, %p261
      %p263 = scmp.ne.s32.totalorder %s255, %s258
      %p264 = scmp.eq.s32.totalorder %s25, 0
      %p265 = por %p263, %p264
      %p266 = scmp.ne.s32.totalorder %s255, %s258
      %p267 = scmp.eq.s32.totalorder %s30, 1
      %p268 = por %p266, %p267
      %p269 = scmp.ne.s32.totalorder %s258, %s259
      %p270 = scmp.eq.s32.totalorder %s30, 0
      %p271 = por %p269, %p270
      %p272 = scmp.ne.s32.totalorder %s258, %s259
      %p273 = scmp.eq.s32.totalorder %s31, 1
      %p274 = por %p272, %p273
      %p276 = scmp.ne.s32.totalorder %s259, %s275
      %p277 = scmp.eq.s32.totalorder %s31, 0
      %p278 = por %p276, %p277
      %p279 = scmp.le.s32.totalorder 1, %s25
      %p280 = scmp.lt.s32.totalorder %s25, 3
      %p281 = pnand %p279, %p280
      %p282 = pneg %p281
      // Predicated region
      $region9: #{tpu_custom_call.1} parent=5 // pred_check
        _
      $region10: #{tpu_custom_call.1} parent=5 // pred_check_branch
        %284 = sbr.rel (%p281) target = $region12
      $region11: #{tpu_custom_call.1} parent=5 // pred_region
        %s285 = ssub.s32 %s25, 1
        // Predicated region
        $region13: #{tpu_custom_call.1} parent=11 // pred_check
          %p286 = pneg %p72
        $region14: #{tpu_custom_call.1} parent=11 // pred_check_branch
          %288 = sbr.rel (%p286) target = $region16
        $region15: #{tpu_custom_call.1} parent=11 // pred_region
          %290 = vsyncadd [#allocation7], 0
          %s291 = sshll.u32 %s1, 4
          %s292 = int_to_ptr.hbm [resolvable:$true] %s291
          %s293 = sshll.u32 [#allocation6], 4
          %s294 = int_to_ptr.vmem [resolvable:$true] %s293
          %299 = dma.hbm_to_vmem [thread:$0]  %s292, 1536, %s294, [#allocation7], 128, 128, 8
        $region16: #{tpu_custom_call.1} parent=11 // pred_fallthru
          _
        // Predicated region
        $region17: #{tpu_custom_call.1} parent=11 // pred_check
          %p300 = pneg %p93
        $region18: #{tpu_custom_call.1} parent=11 // pred_check_branch
          %302 = sbr.rel (%p300) target = $region20
        $region19: #{tpu_custom_call.1} parent=11 // pred_region
          _
        $region20: #{tpu_custom_call.1} parent=11 // pred_fallthru
          _
        // Predicated region
        $region21: #{tpu_custom_call.1} parent=11 // pred_check
          %p303 = pneg %p114
        $region22: #{tpu_custom_call.1} parent=11 // pred_check_branch
          %305 = sbr.rel (%p303) target = $region24
        $region23: #{tpu_custom_call.1} parent=11 // pred_region
          _
        $region24: #{tpu_custom_call.1} parent=11 // pred_fallthru
          _
        // Predicated region
        $region25: #{tpu_custom_call.1} parent=11 // pred_check
          %p306 = pneg %p135
        $region26: #{tpu_custom_call.1} parent=11 // pred_check_branch
          %308 = sbr.rel (%p306) target = $region28
        $region27: #{tpu_custom_call.1} parent=11 // pred_region
          _
        $region28: #{tpu_custom_call.1} parent=11 // pred_fallthru
          _
        // Predicated region
        $region29: #{tpu_custom_call.1} parent=11 // pred_check
          %p309 = pneg %p156
        $region30: #{tpu_custom_call.1} parent=11 // pred_check_branch
          %311 = sbr.rel (%p309) target = $region32
        $region31: #{tpu_custom_call.1} parent=11 // pred_region
          %313 = vsyncadd [#allocation7], 0
          %s314 = sshll.u32 %s5, 4
          %s315 = int_to_ptr.hbm [resolvable:$true] %s314
          %s316 = sshll.u32 [#allocation8], 4
          %s317 = int_to_ptr.vmem [resolvable:$true] %s316
          %322 = dma.hbm_to_vmem [thread:$0]  %s315, 1536, %s317, [#allocation7], 128, 128, 8
        $region32: #{tpu_custom_call.1} parent=11 // pred_fallthru
          _
        // Predicated region
        $region33: #{tpu_custom_call.1} parent=11 // pred_check
          %p323 = pneg %p177
        $region34: #{tpu_custom_call.1} parent=11 // pred_check_branch
          %325 = sbr.rel (%p323) target = $region36
        $region35: #{tpu_custom_call.1} parent=11 // pred_region
          _
        $region36: #{tpu_custom_call.1} parent=11 // pred_fallthru
          _
        // Predicated region
        $region37: #{tpu_custom_call.1} parent=11 // pred_check
          %p326 = pneg %p198
        $region38: #{tpu_custom_call.1} parent=11 // pred_check_branch
          %328 = sbr.rel (%p326) target = $region40
        $region39: #{tpu_custom_call.1} parent=11 // pred_region
          _
        $region40: #{tpu_custom_call.1} parent=11 // pred_fallthru
          _
        // Predicated region
        $region41: #{tpu_custom_call.1} parent=11 // pred_check
          %p329 = pneg %p219
        $region42: #{tpu_custom_call.1} parent=11 // pred_check_branch
          %331 = sbr.rel (%p329) target = $region44
        $region43: #{tpu_custom_call.1} parent=11 // pred_region
          _
        $region44: #{tpu_custom_call.1} parent=11 // pred_fallthru
          _
      $region12: #{tpu_custom_call.1} parent=5 // pred_fallthru
        _
      %p332 = scmp.lt.s32.totalorder %s25, 2
      // Predicated region
      $region45: #{tpu_custom_call.1} parent=5 // pred_check
        %p333 = pneg %p332
      $region46: #{tpu_custom_call.1} parent=5 // pred_check_branch
        %335 = sbr.rel (%p333) target = $region48
      $region47: #{tpu_custom_call.1} parent=5 // pred_region
        // Predicated region
        $region49: #{tpu_custom_call.1} parent=47 // pred_check
          %p336 = pneg %p45
        $region50: #{tpu_custom_call.1} parent=47 // pred_check_branch
          %338 = sbr.rel (%p336) target = $region52
        $region51: #{tpu_custom_call.1} parent=47 // pred_region
          %s339 = sand.u32 %s35, 1
          %s340 = scalar_lea.sflag [#allocation4], %s339
          %s341 = sand.u32 %s35, 1
          %s342 = smul.addr %s341, 8
          %s343 = scalar_lea.vmem [#allocation3], %s342
          %345 = vsyncadd %s340, 0
          %s346 = smul.addr %s25, 8
          %s347 = scalar_lea.hbm %s0, %s346
          %s349 = sshll.u32 %s347, 4
          %s350 = int_to_ptr.hbm [resolvable:$true] %s349
          %s351 = sshll.u32 %s343, 4
          %s352 = int_to_ptr.vmem [resolvable:$true] %s351
          %354 = dma.hbm_to_vmem [thread:$0]  %s350, 128, %s352, %s340
        $region52: #{tpu_custom_call.1} parent=47 // pred_fallthru
          _
        // Predicated region
        $region53: #{tpu_custom_call.1} parent=47 // pred_check
          %p355 = pneg %p239
        $region54: #{tpu_custom_call.1} parent=47 // pred_check_branch
          %357 = sbr.rel (%p355) target = $region56
        $region55: #{tpu_custom_call.1} parent=47 // pred_region
          %p358 = scmp.lt.s32.totalorder %s25, 1
          %s359 = scalar_select %p358, %s25, 1
          %s360 = scalar_lea.vmem %s9, %s359
        $region56: #{tpu_custom_call.1} parent=47 // pred_fallthru
          _
      $region48: #{tpu_custom_call.1} parent=5 // pred_fallthru
        _
      %p361 = scmp.le.s32.totalorder 1, %s25
      %p362 = scmp.lt.s32.totalorder %s25, 3
      %p363 = pnand %p361, %p362
      %p364 = pneg %p363
      // Predicated region
      $region57: #{tpu_custom_call.1} parent=5 // pred_check
        _
      $region58: #{tpu_custom_call.1} parent=5 // pred_check_branch
        %366 = sbr.rel (%p363) target = $region60
      $region59: #{tpu_custom_call.1} parent=5 // pred_region
        %s367 = ssub.s32 %s25, 1
        %s368 = sand.u32 %s38, 1
        %s369 = scalar_lea.sflag [#allocation4], %s368
        %s370 = sand.u32 %s38, 1
        %s371 = smul.addr %s370, 8
        %s372 = scalar_lea.vmem [#allocation3], %s371
        // Predicated region
        $region61: #{tpu_custom_call.1} parent=59 // pred_check
          %p373 = pneg %p51
        $region62: #{tpu_custom_call.1} parent=59 // pred_check_branch
          %375 = sbr.rel (%p373) target = $region64
        $region63: #{tpu_custom_call.1} parent=59 // pred_region
          %377 = dma.done %s369, 128
        $region64: #{tpu_custom_call.1} parent=59 // pred_fallthru
          _
        // Predicated region
        $region65: #{tpu_custom_call.1} parent=59 // pred_check
          %p378 = pneg %p72
        $region66: #{tpu_custom_call.1} parent=59 // pred_check_branch
          %380 = sbr.rel (%p378) target = $region68
        $region67: #{tpu_custom_call.1} parent=59 // pred_region
          %382 = dma.done [#allocation7], 1536
        $region68: #{tpu_custom_call.1} parent=59 // pred_fallthru
          _
        // Predicated region
        $region69: #{tpu_custom_call.1} parent=59 // pred_check
          %p383 = pneg %p156
        $region70: #{tpu_custom_call.1} parent=59 // pred_check_branch
          %385 = sbr.rel (%p383) target = $region72
        $region71: #{tpu_custom_call.1} parent=59 // pred_region
          %387 = dma.done [#allocation7], 1536
        $region72: #{tpu_custom_call.1} parent=59 // pred_fallthru
          _
        %s388 = sand.u32 %s38, 1
        %s389 = scalar_lea.sflag [#allocation4], %s388
        %s390 = sand.u32 %s38, 1
        %s391 = smul.addr %s390, 8
        %s392 = scalar_lea.vmem [#allocation3], %s391
        %p393 = pneg %p51
        %p394 = pneg %p48
        %p395 = pneg %p72
        %p396 = pneg %p69
        %p397 = pneg %p93
        %p398 = pneg %p90
        %p399 = pneg %p114
        %p400 = pneg %p111
        %p401 = pneg %p135
        %p402 = pneg %p132
        %p403 = pneg %p156
        %p404 = pneg %p153
        %p405 = pneg %p177
        %p406 = pneg %p174
        %p407 = pneg %p198
        %p408 = pneg %p195
        %p409 = pneg %p219
        %p410 = pneg %p216
        %p411 = scmp.lt.s32.totalorder %s30, 1
        %s412 = scalar_select %p411, %s30, 1
        %s413 = scalar_lea.vmem %s9, %s412
        %p414 = pneg %p245
        %p415 = pneg %p242
        %p416 = pneg %p271
        %p417 = pneg %p268
        %s418 = sand.u32 %s258, 1
        %s419 = scalar_lea.sflag [#allocation5], %s418
        %s420 = sand.u32 %s258, 1
        %s421 = scalar_lea.vmem [#allocation9], %s420
        %p422 = scmp.lt.s32.totalorder %s30, 1
        %s423 = scalar_select %p422, %s30, 1
        %s424 = scalar_lea.vmem %s9, %s423
        %v425 = vlaneseq
        %v426 = vshrl.u32 %v425, 7
        %vm427 = vcmp.lt.s32.totalorder %v426, 0
        %v428 = vsub.s32 0, %v426
        %v429 = vsel %vm427, %v428, %v426
        %v430 = vshrl.u32 %v429, 3
        %v431 = vand.u32 %v429, 7
        %v432 = vsub.s32 0, %v431
        %v433 = vsel %vm427, %v432, %v431
        %vm434 = vcmp.ne.s32.totalorder %v433, 0
        %vm435 = vcmp.lt.s32.totalorder %v433, 0
        %vm436 = vmand %vm435, %vm434
        %v437 = vadd.s32 %v433, 8
        %v438 = vsel %vm436, %v437, %v433
        %v439 = vadd.s32 %v438, 4294967295
        %vm440 = vcmp.ge.s32.totalorder %v439, 0
        %vm441 = vcmp.le.s32.totalorder %v439, 7
        %vm442 = vmand %vm440, %vm441
        %v443 = vadd.s32 %v438, 1
        %vm444 = vcmp.ge.s32.totalorder %v443, 0
        %vm445 = vcmp.le.s32.totalorder %v443, 7
        %vm446 = vmand %vm444, %vm445
        %v447 = vld [vmem:[%s372] sm:$0xff]
        %v449 = vrot.slane %v447, 7
        %vm451 = vcmask 1040384
        %v452 = vsel %vm451, %v449, %v449
        %v453 = vsel %vm442, 1, 0
        %vm454 = vcmp.eq.s32.totalorder %v453, 1
        %v455 = vsel %vm454, %v452, 0.0
        %v456 = vld [vmem:[#allocation6] sm:$0xff]
        %v457 = vld [vmem:[#allocation6 + $0x8] sm:$0xff]
        %v458 = vld [vmem:[#allocation6 + $0x10] sm:$0xff]
        %v459 = vld [vmem:[#allocation6 + $0x18] sm:$0xff]
        %s460 = scalar_lea.vmem [#allocation6], 32
        %v461 = vld [vmem:[%s460] sm:$0xff]
        %v462 = vld [vmem:[%s460 + $0x8] sm:$0xff]
        %v463 = vld [vmem:[%s460 + $0x10] sm:$0xff]
        %v464 = vld [vmem:[%s460 + $0x18] sm:$0xff]
        %vm465 = vcmask 261120
        %v466 = vsel %vm465, %v447, 0
        %468 = vmatpush.msra.mxu0 0.0
        %469 = vmatpush.msra.mxu0 0.0
        %470 = vmatpush.msra.mxu0 0.0
        %471 = vmatpush.msra.mxu0 0.0
        %472 = vmatpush.msra.mxu0 0.0
        %473 = vmatpush.msra.mxu0 0.0
        %474 = vmatpush.msra.mxu0 0.0
        %475 = vmatpush.msra.mxu0 0.0
        %476 = vmatpush.msra.mxu0 0.0
        %477 = vmatpush.msra.mxu0 0.0
        %478 = vmatpush.msra.mxu0 0.0
        %479 = vmatpush.msra.mxu0 0.0
        %480 = vmatpush.msra.mxu0 %v464
        %481 = vmatpush.msra.mxu0 %v463
        %482 = vmatpush.msra.mxu0 %v462
        %483 = vmatpush.msra.mxu0 %v461
        %484 = vmatmul.f32.gmra.mxu0 %v466
        %v485 = vpop.f32.mrf.mxu0
        %v486 = vadd.f32 0.0, %v485
        %487 = vdwg.mxu0
        %v489 = vsel %vm465, %v455, 0
        %491 = vmatpush.msra.mxu0 0.0
        %492 = vmatpush.msra.mxu0 0.0
        %493 = vmatpush.msra.mxu0 0.0
        %494 = vmatpush.msra.mxu0 0.0
        %495 = vmatpush.msra.mxu0 0.0
        %496 = vmatpush.msra.mxu0 0.0
        %497 = vmatpush.msra.mxu0 0.0
        %498 = vmatpush.msra.mxu0 0.0
        %499 = vmatpush.msra.mxu0 0.0
        %500 = vmatpush.msra.mxu0 0.0
        %501 = vmatpush.msra.mxu0 0.0
        %502 = vmatpush.msra.mxu0 0.0
        %503 = vmatpush.msra.mxu0 %v459
        %504 = vmatpush.msra.mxu0 %v458
        %505 = vmatpush.msra.mxu0 %v457
        %506 = vmatpush.msra.mxu0 %v456
        %507 = vmatmul.f32.gmra.mxu0 %v489
        %v508 = vpop.f32.mrf.mxu0
        %v509 = vadd.f32 %v486, %v508
        %510 = vdwg.mxu0
        %v511 = vrot.slane %v447, 1
        %vm513 = vcmask 1046528
        %v514 = vsel %vm513, %v511, %v511
        %v515 = vsel %vm446, 1, 0
        %vm516 = vcmp.eq.s32.totalorder %v515, 1
        %v517 = vsel %vm516, %v514, 0.0
        %s518 = scalar_lea.vmem [#allocation6], 64
        %v519 = vld [vmem:[%s518] sm:$0xff]
        %v520 = vld [vmem:[%s518 + $0x8] sm:$0xff]
        %v521 = vld [vmem:[%s518 + $0x10] sm:$0xff]
        %v522 = vld [vmem:[%s518 + $0x18] sm:$0xff]
        %v524 = vsel %vm465, %v517, 0
        %526 = vmatpush.msra.mxu0 0.0
        %527 = vmatpush.msra.mxu0 0.0
        %528 = vmatpush.msra.mxu0 0.0
        %529 = vmatpush.msra.mxu0 0.0
        %530 = vmatpush.msra.mxu0 0.0
        %531 = vmatpush.msra.mxu0 0.0
        %532 = vmatpush.msra.mxu0 0.0
        %533 = vmatpush.msra.mxu0 0.0
        %534 = vmatpush.msra.mxu0 0.0
        %535 = vmatpush.msra.mxu0 0.0
        %536 = vmatpush.msra.mxu0 0.0
        %537 = vmatpush.msra.mxu0 0.0
        %538 = vmatpush.msra.mxu0 %v522
        %539 = vmatpush.msra.mxu0 %v521
        %540 = vmatpush.msra.mxu0 %v520
        %541 = vmatpush.msra.mxu0 %v519
        %542 = vmatmul.f32.gmra.mxu0 %v524
        %v543 = vpop.f32.mrf.mxu0
        %v544 = vadd.f32 0.0, %v543
        %545 = vdwg.mxu0
        %v546 = vadd.f32 %v509, %v544
        %v547 = vld [vmem:[%s2] sm:$0x1]
        %v549 = vperm.slane %v547, 0
        %v551 = vadd.f32 %v546, %v549
        %v552 = vmax.f32 %v551, 0.0
        %v553 = vsel %vm465, %v552, 0.0
        %554 = vadd.xlane.f32.xlu0 %v553
        %v555 = vpop.xlane.xlu0 %554
        %v556 = vmul.f32 %v552, %v552
        %v557 = vsel %vm465, %v556, 0.0
        %558 = vadd.xlane.f32.xlu0 %v557
        %v559 = vpop.xlane.xlu0 %558
        %v560 = vmul.f32 %v555, 0.03125
        %v561 = vmul.f32 %v559, 0.03125
        %v562 = vmul.f32 %v560, %v560
        %v563 = vsub.f32 %v561, %v562
        %v564 = vmax.f32 %v563, 0.0
        %v565 = vadd.f32 %v564, 1e-05
        %v566 = vrsqrt.pop %v565
        %v567 = vmul.f32 %v566, %v565
        %v568 = vmul.f32 %v567, %v566
        %v569 = vmul.f32 0.5, %v568
        %v570 = vsub.f32 1.5, %v569
        %v571 = vmul.f32 %v566, %v570
        %vm572 = vweird.f32 %v565
        %vm573 = vweird.f32 %v566
        %vm574 = vmor %vm572, %vm573
        %v575 = vsel %vm574, %v566, %v571
        %v576 = vsub.f32 %v552, %v560
        %v577 = vmul.f32 %v576, %v575
        %v578 = vld [vmem:[%s3] sm:$0x1]
        %v580 = vperm.slane %v578, 0
        %v582 = vmul.f32 %v577, %v580
        %v583 = vld [vmem:[%s4] sm:$0x1]
        %v585 = vperm.slane %v583, 0
        %v587 = vadd.f32 %v582, %v585
        %v589 = vrot.slane %v587, 7
        %v591 = vsel %vm451, %v589, %v589
        %v592 = vsel %vm454, %v591, 0.0
        %v593 = vld [vmem:[#allocation8] sm:$0xff]
        %v594 = vld [vmem:[#allocation8 + $0x8] sm:$0xff]
        %v595 = vld [vmem:[#allocation8 + $0x10] sm:$0xff]
        %v596 = vld [vmem:[#allocation8 + $0x18] sm:$0xff]
        %s597 = scalar_lea.vmem [#allocation8], 32
        %v598 = vld [vmem:[%s597] sm:$0xff]
        %v599 = vld [vmem:[%s597 + $0x8] sm:$0xff]
        %v600 = vld [vmem:[%s597 + $0x10] sm:$0xff]
        %v601 = vld [vmem:[%s597 + $0x18] sm:$0xff]
        %v602 = vsel %vm465, %v587, 0
        %604 = vmatpush.msra.mxu0 0.0
        %605 = vmatpush.msra.mxu0 0.0
        %606 = vmatpush.msra.mxu0 0.0
        %607 = vmatpush.msra.mxu0 0.0
        %608 = vmatpush.msra.mxu0 0.0
        %609 = vmatpush.msra.mxu0 0.0
        %610 = vmatpush.msra.mxu0 0.0
        %611 = vmatpush.msra.mxu0 0.0
        %612 = vmatpush.msra.mxu0 0.0
        %613 = vmatpush.msra.mxu0 0.0
        %614 = vmatpush.msra.mxu0 0.0
        %615 = vmatpush.msra.mxu0 0.0
        %616 = vmatpush.msra.mxu0 %v601
        %617 = vmatpush.msra.mxu0 %v600
        %618 = vmatpush.msra.mxu0 %v599
        %619 = vmatpush.msra.mxu0 %v598
        %620 = vmatmul.f32.gmra.mxu0 %v602
        %v621 = vpop.f32.mrf.mxu0
        %v622 = vadd.f32 0.0, %v621
        %623 = vdwg.mxu0
        %v625 = vsel %vm465, %v592, 0
        %627 = vmatpush.msra.mxu0 0.0
        %628 = vmatpush.msra.mxu0 0.0
        %629 = vmatpush.msra.mxu0 0.0
        %630 = vmatpush.msra.mxu0 0.0
        %631 = vmatpush.msra.mxu0 0.0
        %632 = vmatpush.msra.mxu0 0.0
        %633 = vmatpush.msra.mxu0 0.0
        %634 = vmatpush.msra.mxu0 0.0
        %635 = vmatpush.msra.mxu0 0.0
        %636 = vmatpush.msra.mxu0 0.0
        %637 = vmatpush.msra.mxu0 0.0
        %638 = vmatpush.msra.mxu0 0.0
        %639 = vmatpush.msra.mxu0 %v596
        %640 = vmatpush.msra.mxu0 %v595
        %641 = vmatpush.msra.mxu0 %v594
        %642 = vmatpush.msra.mxu0 %v593
        %643 = vmatmul.f32.gmra.mxu0 %v625
        %v644 = vpop.f32.mrf.mxu0
        %v645 = vadd.f32 %v622, %v644
        %646 = vdwg.mxu0
        %v647 = vrot.slane %v587, 1
        %v649 = vsel %vm513, %v647, %v647
        %v650 = vsel %vm516, %v649, 0.0
        %s651 = scalar_lea.vmem [#allocation8], 64
        %v652 = vld [vmem:[%s651] sm:$0xff]
        %v653 = vld [vmem:[%s651 + $0x8] sm:$0xff]
        %v654 = vld [vmem:[%s651 + $0x10] sm:$0xff]
        %v655 = vld [vmem:[%s651 + $0x18] sm:$0xff]
        %v657 = vsel %vm465, %v650, 0
        %659 = vmatpush.msra.mxu0 0.0
        %660 = vmatpush.msra.mxu0 0.0
        %661 = vmatpush.msra.mxu0 0.0
        %662 = vmatpush.msra.mxu0 0.0
        %663 = vmatpush.msra.mxu0 0.0
        %664 = vmatpush.msra.mxu0 0.0
        %665 = vmatpush.msra.mxu0 0.0
        %666 = vmatpush.msra.mxu0 0.0
        %667 = vmatpush.msra.mxu0 0.0
        %668 = vmatpush.msra.mxu0 0.0
        %669 = vmatpush.msra.mxu0 0.0
        %670 = vmatpush.msra.mxu0 0.0
        %671 = vmatpush.msra.mxu0 %v655
        %672 = vmatpush.msra.mxu0 %v654
        %673 = vmatpush.msra.mxu0 %v653
        %674 = vmatpush.msra.mxu0 %v652
        %675 = vmatmul.f32.gmra.mxu0 %v657
        %v676 = vpop.f32.mrf.mxu0
        %v677 = vadd.f32 0.0, %v676
        %678 = vdwg.mxu0
        %v679 = vadd.f32 %v645, %v677
        %v680 = vld [vmem:[%s6] sm:$0x1]
        %v682 = vperm.slane %v680, 0
        %v684 = vadd.f32 %v679, %v682
        %v685 = vmax.f32 %v684, 0.0
        %v686 = vsel %vm465, %v685, 0.0
        %687 = vadd.xlane.f32.xlu0 %v686
        %v688 = vpop.xlane.xlu0 %687
        %v689 = vmul.f32 %v685, %v685
        %v690 = vsel %vm465, %v689, 0.0
        %691 = vadd.xlane.f32.xlu0 %v690
        %v692 = vpop.xlane.xlu0 %691
        %v693 = vmul.f32 %v688, 0.03125
        %v694 = vmul.f32 %v692, 0.03125
        %v695 = vmul.f32 %v693, %v693
        %v696 = vsub.f32 %v694, %v695
        %v697 = vmax.f32 %v696, 0.0
        %v698 = vadd.f32 %v697, 1e-05
        %v699 = vrsqrt.pop %v698
        %v700 = vmul.f32 %v699, %v698
        %v701 = vmul.f32 %v700, %v699
        %v702 = vmul.f32 0.5, %v701
        %v703 = vsub.f32 1.5, %v702
        %v704 = vmul.f32 %v699, %v703
        %vm705 = vweird.f32 %v698
        %vm706 = vweird.f32 %v699
        %vm707 = vmor %vm705, %vm706
        %v708 = vsel %vm707, %v699, %v704
        %v709 = vsub.f32 %v685, %v693
        %v710 = vmul.f32 %v709, %v708
        %v711 = vld [vmem:[%s7] sm:$0x1]
        %v712 = vld [vmem:[#allocation2] sm:$0x1]
        %714 = vset.pattern.permute.xlu0 0
        %715 = vperm.xlu0 %714, %v712
        %v716 = vpop.permute.xlu0 %715
        %v718 = vperm.slane %v716, 0
        %v720 = vsel %vm465, %v711, 0
        %v723 = vsel %vm465, %v710, 0
        %725 = vmatpush.xpose.msra.mxu0 0.0
        %726 = vmatpush.xpose.msra.mxu0 0.0
        %727 = vmatpush.xpose.msra.mxu0 0.0
        %728 = vmatpush.xpose.msra.mxu0 0.0
        %729 = vmatpush.xpose.msra.mxu0 0.0
        %730 = vmatpush.xpose.msra.mxu0 0.0
        %731 = vmatpush.xpose.msra.mxu0 0.0
        %732 = vmatpush.xpose.msra.mxu0 0.0
        %733 = vmatpush.xpose.msra.mxu0 0.0
        %734 = vmatpush.xpose.msra.mxu0 0.0
        %735 = vmatpush.xpose.msra.mxu0 0.0
        %736 = vmatpush.xpose.msra.mxu0 0.0
        %737 = vmatpush.xpose.msra.mxu0 0.0
        %738 = vmatpush.xpose.msra.mxu0 0.0
        %739 = vmatpush.xpose.msra.mxu0 0.0
        %740 = vmatpush.xpose.msra.mxu0 %v723
        %741 = vmatmul.f32.gmra.mxu0 %v720
        %v742 = vpop.f32.mrf.mxu0
        %v743 = vadd.f32 %v718, %v742
        %744 = vdwg.mxu0
        %v745 = vld [vmem:[%s424] sm:$0x1]
        %v746 = vunpack.c.0.s8 %v745
        %vm747 = vcmp.ne.s32.totalorder %v746, 0
        %v748 = vsel %vm747, 0.0, %v743
        %vm749 = vcmask 57344
        %750 = vst.msk [vmem:[%s421] sm:$0x1] %vm749, %v748
        %s751 = sand.u32 %s258, 1
        %s752 = scalar_lea.sflag [#allocation5], %s751
        %s753 = sand.u32 %s258, 1
        %s754 = scalar_lea.vmem [#allocation9], %s753
        // Predicated region
        $region73: #{tpu_custom_call.1} parent=59 // pred_check
          %p755 = pneg %p268
        $region74: #{tpu_custom_call.1} parent=59 // pred_check_branch
          %757 = sbr.rel (%p755) target = $region76
        $region75: #{tpu_custom_call.1} parent=59 // pred_region
          %759 = vsyncadd %s752, 0
          %s760 = scalar_lea.hbm %s10, %s30
          %s762 = sshll.u32 %s754, 4
          %s763 = int_to_ptr.vmem [resolvable:$true] %s762
          %s764 = sshll.u32 %s760, 4
          %s765 = int_to_ptr.hbm [resolvable:$true] %s764
          %767 = dma.vmem_to_hbm [thread:$0]  %s763, 16, %s765, %s752
        $region76: #{tpu_custom_call.1} parent=59 // pred_fallthru
          _
      $region60: #{tpu_custom_call.1} parent=5 // pred_fallthru
        _
      %p768 = scmp.le.s32.totalorder 2, %s25
      // Predicated region
      $region77: #{tpu_custom_call.1} parent=5 // pred_check
        %p769 = pneg %p768
      $region78: #{tpu_custom_call.1} parent=5 // pred_check_branch
        %771 = sbr.rel (%p769) target = $region80
      $region79: #{tpu_custom_call.1} parent=5 // pred_region
        %s772 = ssub.s32 %s25, 2
        // Predicated region
        $region81: #{tpu_custom_call.1} parent=79 // pred_check
          %p773 = pneg %p274
        $region82: #{tpu_custom_call.1} parent=79 // pred_check_branch
          %775 = sbr.rel (%p773) target = $region84
        $region83: #{tpu_custom_call.1} parent=79 // pred_region
          %s776 = sand.u32 %s259, 1
          %s777 = scalar_lea.sflag [#allocation5], %s776
          %s778 = sand.u32 %s259, 1
          %s779 = scalar_lea.vmem [#allocation9], %s778
          %781 = dma.done %s777, 16
        $region84: #{tpu_custom_call.1} parent=79 // pred_fallthru
          _
      $region80: #{tpu_custom_call.1} parent=5 // pred_fallthru
        _
    $region6: #{tpu_custom_call.1} parent=1 // loop_footer
      %s29 = sadd.s32 1, %s25
    $region7: #{tpu_custom_call.1} parent=1 // loop_footer_branch
      %24 = sbr.rel target = $region3
    $region8: #{tpu_custom_call.1} parent=1 // loop_exit
      _
    %782 = vsyncpa [#allocation4], 1
    %s783 = scalar_lea.sflag [#allocation4], 1
    %784 = vsyncpa %s783, 1
    %785 = vsyncpa [#allocation7], 1
    %786 = vsyncpa [#allocation5], 1
    %s787 = scalar_lea.sflag [#allocation5], 1
    %788 = vsyncpa %s787, 1

</llo_original>
